<compile_context>
chip_gen: v7x
topology: tpu7x:2x2x1
jax: 0.10.0
libtpu: 0.0.40
codegen_flags: <defaults>
</compile_context>

<pallas_src>
import numpy as np
import jax
import jax.numpy as jnp
from jax import lax
from jax.experimental import pallas as pl
from jax.experimental.pallas import tpu as pltpu


def _round_up(x, m):
    return (x + m - 1) // m * m


def _cdiv(a, b):
    return -(-a // b)


# ----------------------------------------------------------------------------
# Kernel 1: BDCovpool.  One grid step handles Bt samples (batched MXU Gram).
# ----------------------------------------------------------------------------
def _bdcov_kernel(et_ref, x_ref, cov_ref):
    # et_ref : (1, 1) SMEM scalar, already exp(temp)  (exp hoisted to wrapper)
    # x_ref  : (Bt, dim, M) VMEM, M left un-padded
    # cov_ref: (Bt, dim, dim) centered BDC matrices
    x = x_ref[...]
    _, dim, _ = x.shape
    et = et_ref[0, 0]

    # Gram matrix per sample: xp[b, i, j] = sum_m x[b,i,m] * x[b,j,m]   (MXU)
    xp = jnp.einsum("bim,bjm->bij", x, x, preferred_element_type=jnp.float32)

    # diag(Gram) from a VPU lane reduction (no eye mask, no ones-matmul).
    d = jnp.sum(x * x, axis=2)                                     # (Bt, dim)

    # pairwise squared distances -> clamp -> temperature -> sqrt
    dcov = d[:, :, None] + d[:, None, :] - 2.0 * xp
    dcov = jnp.maximum(dcov, 0.0)
    dcov = jnp.sqrt(et * dcov + 1e-05)

    # Double centering.  dcov is symmetric, so its column means equal its row
    # means: one lane reduction, no cross-sublane reduction over the tile.
    inv_d = 1.0 / dim
    rmean = jnp.sum(dcov, axis=2) * inv_d                          # (Bt, dim)
    tmean = jnp.sum(rmean, axis=1, keepdims=True) * inv_d          # (Bt, 1)
    cov = dcov - rmean[:, :, None] - rmean[:, None, :] + tmean[:, :, None]
    cov_ref[...] = cov.astype(cov_ref.dtype)


def bdcovpool_pallas(x, temp, block_b=64):
    """x: (B, dim, h, w) f32, temp: (1, 1) f32 -> centered BDC mats (B, dim, dim)."""
    B, dim, h, w = x.shape
    M = h * w
    x = x.reshape(B, dim, M)

    # >= 2 grid steps when possible (v7x has 2 TensorCores and the axis is
    # "parallel"); Bt <= block_b for VMEM; padding is always < one grid step.
    n_steps = max(2, _cdiv(B, block_b)) if B > 1 else 1
    bt = _cdiv(B, n_steps)
    bp = bt * n_steps
    if bp != B:
        x = jnp.pad(x, ((0, bp - B), (0, 0), (0, 0)))

    et = jnp.exp(temp.astype(jnp.float32))        # hoist exp() out of the kernel

    cov = pl.pallas_call(
        _bdcov_kernel,
        out_shape=jax.ShapeDtypeStruct((bp, dim, dim), jnp.float32),
        grid=(n_steps,),
        in_specs=[
            pl.BlockSpec(memory_space=pltpu.MemorySpace.SMEM),     # exp(temp)
            pl.BlockSpec((bt, dim, M), lambda b: (b, 0, 0)),
        ],
        out_specs=pl.BlockSpec((bt, dim, dim), lambda b: (b, 0, 0)),
        compiler_params=pltpu.CompilerParams(dimension_semantics=("parallel",)),
    )(et, x)
    return cov[:B]


# ----------------------------------------------------------------------------
# Kernel 2: few-shot metric on the centered matrices (Triuvec-free, exact).
#   score[i, j] = -sum_{u<=v} (Q_i - S_j)[u,v]^2
#               = -0.5 * sum_{u,v} (1 + eye)[u,v] * (Q_i - S_j)[u,v]^2
# ----------------------------------------------------------------------------
def _metric_kernel(qcov_ref, scov_ref, score_ref):
    # qcov_ref : (TQ, dim, dim) query centered matrices
    # scov_ref : (n_way, dim, dim) support prototypes (resident across steps)
    # score_ref: (TQ, n_way)
    q = qcov_ref[...]
    tq, dim, _ = q.shape
    n_way = scov_ref.shape[0]

    row = lax.broadcasted_iota(jnp.int32, (dim, dim), 0)
    col = lax.broadcasted_iota(jnp.int32, (dim, dim), 1)
    w = 1.0 + (row == col).astype(jnp.float32)                     # (dim, dim)

    lane = lax.broadcasted_iota(jnp.int32, (tq, n_way), 1)
    score = jnp.zeros((tq, n_way), jnp.float32)
    for j in range(n_way):                       # n_way is small and static
        diff = q - scov_ref[j]                                     # (TQ, dim, dim)
        sq = diff * diff * w
        dist = jnp.sum(jnp.sum(sq, axis=2), axis=1, keepdims=True)  # (TQ, 1)
        score = jnp.where(lane == j, -0.5 * dist, score)
    score_ref[...] = score.astype(score_ref.dtype)


def metric_pallas(qcov, scov, block_q=256):
    """qcov: (nq, dim, dim), scov: (n_way, dim, dim) -> score (nq, n_way)."""
    nq, dim, _ = qcov.shape
    n_way = scov.shape[0]

    n_steps = max(2, _cdiv(nq, block_q)) if nq > 8 else 1
    tq = _round_up(_cdiv(nq, n_steps), 8)
    nqp = tq * n_steps
    if nqp != nq:
        qcov = jnp.pad(qcov, ((0, nqp - nq), (0, 0), (0, 0)))

    score = pl.pallas_call(
        _metric_kernel,
        out_shape=jax.ShapeDtypeStruct((nqp, n_way), jnp.float32),
        grid=(n_steps,),
        in_specs=[
            pl.BlockSpec((tq, dim, dim), lambda i: (i, 0, 0)),
            pl.BlockSpec((n_way, dim, dim), lambda i: (0, 0, 0)),
        ],
        out_specs=pl.BlockSpec((tq, n_way), lambda i: (i, 0)),
        compiler_params=pltpu.CompilerParams(dimension_semantics=("parallel",)),
    )(qcov, scov)
    return score[:nq]


# ----------------------------------------------------------------------------
# Glue (plain JAX): prototype mean and cross-entropy.
# ----------------------------------------------------------------------------
def cross_entropy(logits, labels):
    logz = jax.nn.logsumexp(logits, axis=1)
    picked = jnp.take_along_axis(
        logits, labels[:, None].astype(jnp.int32), axis=1)[:, 0]
    return jnp.mean(logz - picked)


class DeepBDCPallas:
    def __init__(self, n_way, k_shot, q_query, prj_num):
        self.n_way = n_way
        self.k_shot = k_shot
        self.q_query = q_query
        self.prj_num = prj_num
        # Same deterministic init as the PyTorch module: input_dim = [64, 7, 7]
        input_dim = [64, 7, 7]
        self.temp = jnp.log(
            1.0 / (2 * input_dim[1] * input_dim[2]) * jnp.ones((1, 1), jnp.float32))

    def forward(self, feat, label):
        cov = bdcovpool_pallas(feat, self.temp)                    # (B, dim, dim)
        dim = cov.shape[1]
        ns = self.n_way * self.k_shot * self.prj_num
        # Prototype = mean of the centered matrices over the shots; Triuvec is
        # linear, so averaging matrices == averaging triuvecs.
        support = cov[:ns].reshape(
            self.n_way, self.k_shot * self.prj_num, dim, dim).mean(axis=1)
        query = cov[ns:]
        score = metric_pallas(query, support)                      # (nq, n_way)
        loss = cross_entropy(score, label[1])
        return score, loss


# ----------------------------------------------------------------------------
# Pure-JAX reference (mirrors the PyTorch math, incl. the explicit triu gather).
# ----------------------------------------------------------------------------
def triuvec(x):
    B, dim, _ = x.shape
    idx = np.nonzero(np.triu(np.ones((dim, dim), dtype=np.float32)).reshape(-1))[0]
    r = x.reshape(B, dim * dim)
    return r[:, idx]


def _forward_ref(feat, label, temp, n_way, k_shot, prj_num):
    B, dim, h, w = feat.shape
    x = feat.reshape(B, dim, h * w)
    xp = jnp.einsum("bim,bjm->bij", x, x, precision=lax.Precision.HIGHEST)
    diag = jnp.diagonal(xp, axis1=1, axis2=2)
    dcov = diag[:, :, None] + diag[:, None, :] - 2.0 * xp
    dcov = jnp.maximum(dcov, 0.0)
    dcov = jnp.exp(temp[0, 0]) * dcov
    dcov = jnp.sqrt(dcov + 1e-05)
    rm = dcov.mean(axis=2, keepdims=True)
    cm = dcov.mean(axis=1, keepdims=True)
    tm = dcov.mean(axis=(1, 2), keepdims=True)
    mat = dcov - rm - cm + tm
    v = triuvec(mat)
    ns = n_way * k_shot * prj_num
    support = v[:ns].reshape(n_way, k_shot * prj_num, -1).mean(axis=1)
    query = v[ns:]
    diff = query[:, None, :] - support[None, :, :]
    score = -jnp.sum(diff * diff, axis=-1)
    loss = cross_entropy(score, label[1])
    return score, loss


if __name__ == "__main__":
    # Small shapes consistent with the module's forward:
    n_way, k_shot, q_query, prj_num = 2, 1, 2, 1
    dim, h, w = 8, 4, 4
    n_support = n_way * k_shot * prj_num          # 2
    n_query = n_way * q_query                     # 4
    B = n_support + n_query                       # 6

    key = jax.random.PRNGKey(0)
    feat = jax.random.normal(key, (B, dim, h, w), dtype=jnp.float32)
    query_labels = jnp.array([0, 0, 1, 1], dtype=jnp.int32)
    label = (None, query_labels)                  # module uses label[1]

    model = DeepBDCPallas(n_way, k_shot, q_query, prj_num)
    score, loss = model.forward(feat, label)
    jax.block_until_ready((score, loss))

    score_ref, loss_ref = _forward_ref(feat, label, model.temp, n_way, k_shot, prj_num)
    np.testing.assert_allclose(np.asarray(score), np.asarray(score_ref),
                               rtol=1e-3, atol=1e-3)
    np.testing.assert_allclose(np.asarray(loss), np.asarray(loss_ref),
                               rtol=1e-3, atol=1e-3)

    print("KERNEL_OK")
</pallas_src>

<mosaic_0001>
module attributes {stable_mosaic.version = 11 : i64} {
  func.func @_bdcov_kernel(%arg0: i32, %arg1: memref<1x1xf32, #tpu.memory_space<smem>>, %arg2: memref<3x8x16xf32, #tpu.memory_space<vmem>>, %arg3: memref<3x8x8xf32, #tpu.memory_space<vmem>>) attributes {dimension_semantics = [#tpu.dimension_semantics<parallel>], iteration_bounds = array<i64: 2>, scalar_prefetch = 0 : i64, scratch_operands = 0 : i64, tpu.core_type = #tpu.core_type<tc>, window_params = [{transform_indices = @transform_0, window_bounds = array<i64: 1, 1>}, {transform_indices = @transform_1, window_bounds = array<i64: 3, 8, 16>}, {transform_indices = @transform_2, window_bounds = array<i64: 3, 8, 8>}]} {
    %c0 = arith.constant 0 : index
    %c0_0 = arith.constant 0 : index
    %c0_1 = arith.constant 0 : index
    %0 = vector.load %arg2[%c0, %c0_0, %c0_1] : memref<3x8x16xf32, #tpu.memory_space<vmem>>, vector<3x8x16xf32>
    %c0_2 = arith.constant 0 : index
    %c0_3 = arith.constant 0 : index
    %1 = memref.load %arg1[%c0_2, %c0_3] : memref<1x1xf32, #tpu.memory_space<smem>>
    "tpu.trace_start"() <{level = 10 : i32, message = "bim,bjm->bij"}> : () -> ()
    %cst = arith.constant dense<0.000000e+00> : vector<3x8x8xf32>
    %2 = tpu.matmul %0, %0, %cst {dimension_numbers = #tpu.dot_dimension_numbers<[2], [2], [1], [1], [0, 0, 0, 1, 1, 1], [0], [0]>} : vector<3x8x16xf32>, vector<3x8x16xf32>, vector<3x8x8xf32> -> vector<3x8x8xf32>
    "tpu.trace_stop"() : () -> ()
    %3 = arith.mulf %0, %0 : vector<3x8x16xf32>
    %cst_4 = arith.constant dense<0.000000e+00> : vector<3x8xf32>
    %4 = vector.multi_reduction <add>, %3, %cst_4 [2] : vector<3x8x16xf32> to vector<3x8xf32>
    %5 = vector.shape_cast %4 : vector<3x8xf32> to vector<3x8x1xf32>
    %6 = vector.shape_cast %4 : vector<3x8xf32> to vector<3x1x8xf32>
    %7 = vector.broadcast %5 : vector<3x8x1xf32> to vector<3x8x8xf32>
    %8 = vector.broadcast %6 : vector<3x1x8xf32> to vector<3x8x8xf32>
    %9 = arith.addf %7, %8 : vector<3x8x8xf32>
    %cst_5 = arith.constant 2.000000e+00 : f32
    %10 = vector.broadcast %cst_5 : f32 to vector<3x8x8xf32>
    %11 = arith.mulf %10, %2 : vector<3x8x8xf32>
    %12 = arith.subf %9, %11 : vector<3x8x8xf32>
    %cst_6 = arith.constant 0.000000e+00 : f32
    %13 = vector.broadcast %cst_6 : f32 to vector<3x8x8xf32>
    %14 = arith.maximumf %12, %13 : vector<3x8x8xf32>
    %15 = vector.broadcast %1 : f32 to vector<3x8x8xf32>
    %16 = arith.mulf %15, %14 : vector<3x8x8xf32>
    %cst_7 = arith.constant 9.99999974E-6 : f32
    %17 = vector.broadcast %cst_7 : f32 to vector<3x8x8xf32>
    %18 = arith.addf %16, %17 : vector<3x8x8xf32>
    %19 = math.sqrt %18 : vector<3x8x8xf32>
    %cst_8 = arith.constant dense<0.000000e+00> : vector<3x8xf32>
    %20 = vector.multi_reduction <add>, %19, %cst_8 [2] : vector<3x8x8xf32> to vector<3x8xf32>
    %cst_9 = arith.constant 1.250000e-01 : f32
    %21 = vector.broadcast %cst_9 : f32 to vector<3x8xf32>
    %22 = arith.mulf %20, %21 : vector<3x8xf32>
    %cst_10 = arith.constant dense<0.000000e+00> : vector<3xf32>
    %23 = vector.multi_reduction <add>, %22, %cst_10 [1] : vector<3x8xf32> to vector<3xf32>
    %24 = vector.shape_cast %23 : vector<3xf32> to vector<3x1xf32>
    %cst_11 = arith.constant 1.250000e-01 : f32
    %25 = vector.broadcast %cst_11 : f32 to vector<3x1xf32>
    %26 = arith.mulf %24, %25 : vector<3x1xf32>
    %27 = vector.shape_cast %22 : vector<3x8xf32> to vector<3x8x1xf32>
    %28 = vector.broadcast %27 : vector<3x8x1xf32> to vector<3x8x8xf32>
    %29 = arith.subf %19, %28 : vector<3x8x8xf32>
    %30 = vector.shape_cast %22 : vector<3x8xf32> to vector<3x1x8xf32>
    %31 = vector.broadcast %30 : vector<3x1x8xf32> to vector<3x8x8xf32>
    %32 = arith.subf %29, %31 : vector<3x8x8xf32>
    %33 = vector.shape_cast %26 : vector<3x1xf32> to vector<3x1x1xf32>
    %34 = vector.broadcast %33 : vector<3x1x1xf32> to vector<3x8x8xf32>
    %35 = arith.addf %32, %34 : vector<3x8x8xf32>
    %c0_12 = arith.constant 0 : index
    %c0_13 = arith.constant 0 : index
    %c0_14 = arith.constant 0 : index
    %36 = vector.load %arg3[%c0_12, %c0_13, %c0_14] : memref<3x8x8xf32, #tpu.memory_space<vmem>>, vector<3x8x8xf32>
    tpu.vector_store %arg3[%c0_12, %c0_13, %c0_14], %35 {strides = array<i32>} : memref<3x8x8xf32, #tpu.memory_space<vmem>>, vector<3x8x8xf32>,
    return
  }
  func.func @transform_0(%arg0: i32) -> (i32, i32) {
    %c0_i32 = arith.constant 0 : i32
    %c0_i32_0 = arith.constant 0 : i32
    %c0_i32_1 = arith.constant 0 : i32
    return %c0_i32, %c0_i32_0 : i32, i32
  }
  func.func @transform_1(%arg0: i32) -> (i32, i32, i32) {
    %c0_i32 = arith.constant 0 : i32
    %c0_i32_0 = arith.constant 0 : i32
    %c0_i32_1 = arith.constant 0 : i32
    return %arg0, %c0_i32, %c0_i32_0 : i32, i32, i32
  }
  func.func @transform_2(%arg0: i32) -> (i32, i32, i32) {
    %c0_i32 = arith.constant 0 : i32
    %c0_i32_0 = arith.constant 0 : i32
    %c0_i32_1 = arith.constant 0 : i32
    return %arg0, %c0_i32, %c0_i32_0 : i32, i32, i32
  }
}

</mosaic_0001>

<llo_original>
// kernel: tpu_custom_call.1
$region0: #{tpu_custom_call.1}
  #allocation0 [shape = 'u32[]', space=smem, size = 0x4, offset = 0x4, fixed_abs, tag = 'smem constant byte address 0x4 - core index']
  #allocation1 [shape = 'u32[144,128]{1,0:T(1,128)}', space=vmem, size = 0x12000, scoped, tag = 'internal scratch']
  #allocation2 [shape = 'f32[1,1]{1,0:T(1,128)S(6)}', space=smem, size = 0x200, scoped, tag = 'scoped memory for tpu_custom_call.1']
  %s0 = inlined_call_operand.<no memory space> [shape: f32[1,1], index: 0, kind: input, shape index: {}]
  %s1 = inlined_call_operand.hbm [shape: f32[6,8,16], index: 1, kind: input, shape index: {}]
  %s2 = inlined_call_operand.hbm [shape: f32[6,8,8], index: 2, kind: output, shape index: {}]
  %s3 = sld [smem:[#allocation0]]
  $region45: #{tpu_custom_call.1} parent=0
    _
  %s5 = ssub.s32 1, %s3
  %s6 = scalar_select 0, %s5, %s3
  %7 = sst [smem:[#allocation2]] %s0
  $region1: #{tpu_custom_call.1} parent=0
    #allocation3 [shape = 'u8[24576]{0}', space=vmem, size = 0x6000, scoped, tag = 'input window, operand 1']
    #allocation4 [shape = 's32[2]{0}', space=sflag, size = 0x8, scoped, tag = 'scoped memory for tpu_custom_call.1']
    #allocation5 [shape = 's32[2]{0}', space=sflag, size = 0x8, scoped, tag = 'scoped memory for tpu_custom_call.1']
    #allocation6 [shape = 'u8[24576]{0}', space=vmem, size = 0x6000, scoped, tag = 'output window, operand 0']
    %8 = vsyncpa [#allocation4], 0
    %s9 = scalar_lea.sflag [#allocation4], 1
    %10 = vsyncpa %s9, 0
    %11 = vsyncpa [#allocation5], 0
    %s12 = scalar_lea.sflag [#allocation5], 1
    %13 = vsyncpa %s12, 0
    loop: start=0, step=1, limit=4
    $region2: #{tpu_custom_call.1} parent=1 // loop_pre_header
      _
    $region3: #{tpu_custom_call.1} parent=1 // loop_header
      %s15 = sphi 0, %s19
      %p16 = scmp.ge.s32.totalorder %s15, 4
      %s23 = sphi 0, %s23
      %s25 = sphi 0, %s23
      %s26 = sphi 0, %s25
      %s40 = sphi 0, %s26
      %s46 = sphi 0, %s48
      %s49 = sphi 0, %s46
      %s50 = sphi 0, %s49
      %s66 = sphi 0, %s50
      %s72 = sphi 0, %s74
      %s75 = sphi 0, %s72
      %s76 = sphi 0, %s75
      %s92 = sphi 0, %s76
    $region4: #{tpu_custom_call.1} parent=1 // loop_header_branch
      %18 = sbr.rel (%p16) target = $region8
    $region5: #{tpu_custom_call.1} parent=1 // loop_body
      %s20 = ssub.s32 %s15, 1
      %s21 = ssub.s32 %s15, 2
      %s22 = sadd.s32 %s15, 1
      %s24 = sadd.s32 %s23, 1
      %p27 = scmp.eq.s32.totalorder %s15, 1
      %p28 = scmp.ne.s32.totalorder %s23, %s25
      %p29 = scmp.eq.s32.totalorder %s15, 0
      %p30 = por %p28, %p29
      %p31 = scmp.ne.s32.totalorder %s23, %s25
      %p32 = scmp.eq.s32.totalorder %s20, 1
      %p33 = por %p31, %p32
      %p34 = scmp.ne.s32.totalorder %s25, %s26
      %p35 = scmp.eq.s32.totalorder %s20, 0
      %p36 = por %p34, %p35
      %p37 = scmp.ne.s32.totalorder %s25, %s26
      %p38 = scmp.eq.s32.totalorder %s21, 1
      %p39 = por %p37, %p38
      %p41 = scmp.ne.s32.totalorder %s26, %s40
      %p42 = scmp.eq.s32.totalorder %s21, 0
      %p43 = por %p41, %p42
      %s44 = ssub.s32 %s15, %s22
      %p45 = scmp.eq.s32.totalorder %s44, 0
      %s47 = sadd.s32 %s46, 1
      %s48 = scalar_select %p45, %s46, %s47
      %p51 = pneg %p45
      %p52 = scmp.eq.s32.totalorder %s15, 1
      %p53 = por %p51, %p52
      %p54 = scmp.ne.s32.totalorder %s46, %s49
      %p55 = scmp.eq.s32.totalorder %s15, 0
      %p56 = por %p54, %p55
      %p57 = scmp.ne.s32.totalorder %s46, %s49
      %p58 = scmp.eq.s32.totalorder %s20, 1
      %p59 = por %p57, %p58
      %p60 = scmp.ne.s32.totalorder %s49, %s50
      %p61 = scmp.eq.s32.totalorder %s20, 0
      %p62 = por %p60, %p61
      %p63 = scmp.ne.s32.totalorder %s49, %s50
      %p64 = scmp.eq.s32.totalorder %s21, 1
      %p65 = por %p63, %p64
      %p67 = scmp.ne.s32.totalorder %s50, %s66
      %p68 = scmp.eq.s32.totalorder %s21, 0
      %p69 = por %p67, %p68
      %s70 = ssub.s32 %s15, %s22
      %p71 = scmp.eq.s32.totalorder %s70, 0
      %s73 = sadd.s32 %s72, 1
      %s74 = scalar_select %p71, %s72, %s73
      %p77 = pneg %p71
      %p78 = scmp.eq.s32.totalorder %s15, 1
      %p79 = por %p77, %p78
      %p80 = scmp.ne.s32.totalorder %s72, %s75
      %p81 = scmp.eq.s32.totalorder %s15, 0
      %p82 = por %p80, %p81
      %p83 = scmp.ne.s32.totalorder %s72, %s75
      %p84 = scmp.eq.s32.totalorder %s20, 1
      %p85 = por %p83, %p84
      %p86 = scmp.ne.s32.totalorder %s75, %s76
      %p87 = scmp.eq.s32.totalorder %s20, 0
      %p88 = por %p86, %p87
      %p89 = scmp.ne.s32.totalorder %s75, %s76
      %p90 = scmp.eq.s32.totalorder %s21, 1
      %p91 = por %p89, %p90
      %p93 = scmp.ne.s32.totalorder %s76, %s92
      %p94 = scmp.eq.s32.totalorder %s21, 0
      %p95 = por %p93, %p94
      %p96 = scmp.le.s32.totalorder 1, %s15
      %p97 = scmp.lt.s32.totalorder %s15, 3
      %p98 = pnand %p96, %p97
      %p99 = pneg %p98
      // Predicated region
      $region9: #{tpu_custom_call.1} parent=5 // pred_check
        _
      $region10: #{tpu_custom_call.1} parent=5 // pred_check_branch
        %101 = sbr.rel (%p98) target = $region12
      $region11: #{tpu_custom_call.1} parent=5 // pred_region
        %s102 = ssub.s32 %s15, 1
        // Predicated region
        $region13: #{tpu_custom_call.1} parent=11 // pred_check
          %p103 = pneg %p36
        $region14: #{tpu_custom_call.1} parent=11 // pred_check_branch
          %105 = sbr.rel (%p103) target = $region16
        $region15: #{tpu_custom_call.1} parent=11 // pred_region
          _
        $region16: #{tpu_custom_call.1} parent=11 // pred_fallthru
          _
      $region12: #{tpu_custom_call.1} parent=5 // pred_fallthru
        _
      %p106 = scmp.lt.s32.totalorder %s15, 2
      // Predicated region
      $region17: #{tpu_custom_call.1} parent=5 // pred_check
        %p107 = pneg %p106
      $region18: #{tpu_custom_call.1} parent=5 // pred_check_branch
        %109 = sbr.rel (%p107) target = $region20
      $region19: #{tpu_custom_call.1} parent=5 // pred_region
        // Predicated region
        $region21: #{tpu_custom_call.1} parent=19 // pred_check
          %p110 = pneg %p56
        $region22: #{tpu_custom_call.1} parent=19 // pred_check_branch
          %112 = sbr.rel (%p110) target = $region24
        $region23: #{tpu_custom_call.1} parent=19 // pred_region
          %s113 = sand.u32 %s46, 1
          %s114 = scalar_lea.sflag [#allocation4], %s113
          %s115 = sand.u32 %s46, 1
          %s116 = smul.addr %s115, 24
          %s117 = scalar_lea.vmem [#allocation3], %s116
          %s118 = smul.u32 3, %s15
          %s120 = ssub.s32 384, 384
          %121 = vsyncadd %s114, %s120
          %s122 = smul.addr %s118, 128
          %s123 = scalar_lea.hbm %s1, %s122
          %s124 = sshll.u32 %s117, 4
          %s125 = int_to_ptr.vmem [resolvable:$true] %s124
          %130 = dma.hbm_to_vmem [thread:$0]  %s123, 384, %s125, %s114, 128, 128, 8
        $region24: #{tpu_custom_call.1} parent=19 // pred_fallthru
          _
      $region20: #{tpu_custom_call.1} parent=5 // pred_fallthru
        _
      %p131 = scmp.le.s32.totalorder 1, %s15
      %p132 = scmp.lt.s32.totalorder %s15, 3
      %p133 = pnand %p131, %p132
      %p134 = pneg %p133
      // Predicated region
      $region25: #{tpu_custom_call.1} parent=5 // pred_check
        _
      $region26: #{tpu_custom_call.1} parent=5 // pred_check_branch
        %136 = sbr.rel (%p133) target = $region28
      $region27: #{tpu_custom_call.1} parent=5 // pred_region
        %s137 = ssub.s32 %s15, 1
        %s138 = sand.u32 %s49, 1
        %s139 = scalar_lea.sflag [#allocation4], %s138
        %s140 = sand.u32 %s49, 1
        %s141 = smul.addr %s140, 24
        %s142 = scalar_lea.vmem [#allocation3], %s141
        // Predicated region
        $region29: #{tpu_custom_call.1} parent=27 // pred_check
          %p143 = pneg %p62
        $region30: #{tpu_custom_call.1} parent=27 // pred_check_branch
          %145 = sbr.rel (%p143) target = $region32
        $region31: #{tpu_custom_call.1} parent=27 // pred_region
          %146 = dma.done %s139, 384
        $region32: #{tpu_custom_call.1} parent=27 // pred_fallthru
          _
        %p147 = pneg %p36
        %p148 = pneg %p33
        %s149 = sand.u32 %s49, 1
        %s150 = scalar_lea.sflag [#allocation4], %s149
        %s151 = sand.u32 %s49, 1
        %s152 = smul.addr %s151, 24
        %s153 = scalar_lea.vmem [#allocation3], %s152
        %p154 = pneg %p62
        %p155 = pneg %p59
        %p156 = pneg %p88
        %p157 = pneg %p85
        %s158 = sand.u32 %s75, 1
        %s159 = scalar_lea.sflag [#allocation5], %s158
        %s160 = sand.u32 %s75, 1
        %s161 = smul.addr %s160, 24
        %s162 = scalar_lea.vmem [#allocation6], %s161
        %s163 = smul.u32 3, %s20
        %s164 = smul.u32 3, %s20
        %v165 = vld [vmem:[%s142] sm:$0xff]
        %v166 = vld [vmem:[%s142 + $0x8] sm:$0xff]
        %v167 = vld [vmem:[%s142 + $0x10] sm:$0xff]
        %s168 = sld [smem:[#allocation2]]
        %vm169 = vcmask 130048
        %v171 = vsel %vm169, %v165, 0
        %173 = vmatprep.subr.mxu0 0.0
        %174 = vmatpush1.xpose.msra.mxu0 %v171
        %175 = vmatprep.subr.mxu0 0.0
        %176 = vmatpush1.xpose.msra.mxu0 0.0
        %177 = vmatprep.subr.mxu0 0.0
        %178 = vmatpush1.xpose.msra.mxu0 0.0
        %179 = vmatprep.subr.mxu0 0.0
        %180 = vmatpush1.xpose.msra.mxu0 0.0
        %181 = vmatprep.subr.mxu0 0.0
        %182 = vmatpush1.xpose.msra.mxu0 0.0
        %183 = vmatprep.subr.mxu0 0.0
        %184 = vmatpush1.xpose.msra.mxu0 0.0
        %185 = vmatprep.subr.mxu0 0.0
        %186 = vmatpush1.xpose.msra.mxu0 0.0
        %187 = vmatprep.subr.mxu0 0.0
        %188 = vmatpush1.xpose.msra.mxu0 0.0
        %189 = vmatprep.subr.mxu0 0.0
        %190 = vmatpush1.xpose.msra.mxu0 0.0
        %191 = vmatprep.subr.mxu0 0.0
        %192 = vmatpush1.xpose.msra.mxu0 0.0
        %193 = vmatprep.subr.mxu0 0.0
        %194 = vmatpush1.xpose.msra.mxu0 0.0
        %195 = vmatprep.subr.mxu0 0.0
        %196 = vmatpush1.xpose.msra.mxu0 0.0
        %197 = vmatprep.subr.mxu0 0.0
        %198 = vmatpush1.xpose.msra.mxu0 0.0
        %199 = vmatprep.subr.mxu0 0.0
        %200 = vmatpush1.xpose.msra.mxu0 0.0
        %201 = vmatprep.subr.mxu0 0.0
        %202 = vmatpush1.xpose.msra.mxu0 0.0
        %203 = vmatprep.subr.mxu0 0.0
        %204 = vmatpush1.xpose.msra.mxu0 0.0
        %205 = vmatprep.subr.mxu0 0.0
        %206 = vmatpush1.xpose.msra.mxu0 0.0
        %207 = vmatprep.subr.mxu0 0.0
        %208 = vmatpush1.xpose.msra.mxu0 0.0
        %209 = vmatprep.subr.mxu0 0.0
        %210 = vmatpush1.xpose.msra.mxu0 0.0
        %211 = vmatprep.subr.mxu0 0.0
        %212 = vmatpush1.xpose.msra.mxu0 0.0
        %213 = vmatprep.subr.mxu0 0.0
        %214 = vmatpush1.xpose.msra.mxu0 0.0
        %215 = vmatprep.subr.mxu0 0.0
        %216 = vmatpush1.xpose.msra.mxu0 0.0
        %217 = vmatprep.subr.mxu0 0.0
        %218 = vmatpush1.xpose.msra.mxu0 0.0
        %219 = vmatprep.subr.mxu0 0.0
        %220 = vmatpush1.xpose.msra.mxu0 0.0
        %221 = vmatprep.subr.mxu0 0.0
        %222 = vmatpush1.xpose.msra.mxu0 0.0
        %223 = vmatprep.subr.mxu0 0.0
        %224 = vmatpush1.xpose.msra.mxu0 0.0
        %225 = vmatprep.subr.mxu0 0.0
        %226 = vmatpush1.xpose.msra.mxu0 0.0
        %227 = vmatprep.subr.mxu0 0.0
        %228 = vmatpush1.xpose.msra.mxu0 0.0
        %229 = vmatprep.subr.mxu0 0.0
        %230 = vmatpush1.xpose.msra.mxu0 0.0
        %231 = vmatprep.subr.mxu0 0.0
        %232 = vmatpush1.xpose.msra.mxu0 0.0
        %233 = vmatprep.subr.mxu0 0.0
        %234 = vmatpush1.xpose.msra.mxu0 0.0
        %235 = vmatprep.subr.mxu0 0.0
        %236 = vmatpush1.xpose.msra.mxu0 0.0
        %237 = vmatprep.mubr.f32.mxu0 0.0
        %238 = vmatmul.mubr.f32.gmra.mrb[0].mxu0 %v171
        %v239 = vpop.f32.mrb[0].mxu0
        %v240 = vadd.f32 0.0, %v239
        %v241 = vpop.f32.mrb[0].mxu0
        %242 = vdwg.mxu0
        %v244 = vsel %vm169, %v166, 0
        %246 = vmatprep.subr.mxu0 0.0
        %247 = vmatpush1.xpose.msra.mxu0 %v244
        %248 = vmatprep.subr.mxu0 0.0
        %249 = vmatpush1.xpose.msra.mxu0 0.0
        %250 = vmatprep.subr.mxu0 0.0
        %251 = vmatpush1.xpose.msra.mxu0 0.0
        %252 = vmatprep.subr.mxu0 0.0
        %253 = vmatpush1.xpose.msra.mxu0 0.0
        %254 = vmatprep.subr.mxu0 0.0
        %255 = vmatpush1.xpose.msra.mxu0 0.0
        %256 = vmatprep.subr.mxu0 0.0
        %257 = vmatpush1.xpose.msra.mxu0 0.0
        %258 = vmatprep.subr.mxu0 0.0
        %259 = vmatpush1.xpose.msra.mxu0 0.0
        %260 = vmatprep.subr.mxu0 0.0
        %261 = vmatpush1.xpose.msra.mxu0 0.0
        %262 = vmatprep.subr.mxu0 0.0
        %263 = vmatpush1.xpose.msra.mxu0 0.0
        %264 = vmatprep.subr.mxu0 0.0
        %265 = vmatpush1.xpose.msra.mxu0 0.0
        %266 = vmatprep.subr.mxu0 0.0
        %267 = vmatpush1.xpose.msra.mxu0 0.0
        %268 = vmatprep.subr.mxu0 0.0
        %269 = vmatpush1.xpose.msra.mxu0 0.0
        %270 = vmatprep.subr.mxu0 0.0
        %271 = vmatpush1.xpose.msra.mxu0 0.0
        %272 = vmatprep.subr.mxu0 0.0
        %273 = vmatpush1.xpose.msra.mxu0 0.0
        %274 = vmatprep.subr.mxu0 0.0
        %275 = vmatpush1.xpose.msra.mxu0 0.0
        %276 = vmatprep.subr.mxu0 0.0
        %277 = vmatpush1.xpose.msra.mxu0 0.0
        %278 = vmatprep.subr.mxu0 0.0
        %279 = vmatpush1.xpose.msra.mxu0 0.0
        %280 = vmatprep.subr.mxu0 0.0
        %281 = vmatpush1.xpose.msra.mxu0 0.0
        %282 = vmatprep.subr.mxu0 0.0
        %283 = vmatpush1.xpose.msra.mxu0 0.0
        %284 = vmatprep.subr.mxu0 0.0
        %285 = vmatpush1.xpose.msra.mxu0 0.0
        %286 = vmatprep.subr.mxu0 0.0
        %287 = vmatpush1.xpose.msra.mxu0 0.0
        %288 = vmatprep.subr.mxu0 0.0
        %289 = vmatpush1.xpose.msra.mxu0 0.0
        %290 = vmatprep.subr.mxu0 0.0
        %291 = vmatpush1.xpose.msra.mxu0 0.0
        %292 = vmatprep.subr.mxu0 0.0
        %293 = vmatpush1.xpose.msra.mxu0 0.0
        %294 = vmatprep.subr.mxu0 0.0
        %295 = vmatpush1.xpose.msra.mxu0 0.0
        %296 = vmatprep.subr.mxu0 0.0
        %297 = vmatpush1.xpose.msra.mxu0 0.0
        %298 = vmatprep.subr.mxu0 0.0
        %299 = vmatpush1.xpose.msra.mxu0 0.0
        %300 = vmatprep.subr.mxu0 0.0
        %301 = vmatpush1.xpose.msra.mxu0 0.0
        %302 = vmatprep.subr.mxu0 0.0
        %303 = vmatpush1.xpose.msra.mxu0 0.0
        %304 = vmatprep.subr.mxu0 0.0
        %305 = vmatpush1.xpose.msra.mxu0 0.0
        %306 = vmatprep.subr.mxu0 0.0
        %307 = vmatpush1.xpose.msra.mxu0 0.0
        %308 = vmatprep.subr.mxu0 0.0
        %309 = vmatpush1.xpose.msra.mxu0 0.0
        %310 = vmatprep.mubr.f32.mxu0 0.0
        %311 = vmatmul.mubr.f32.gmra.mrb[0].mxu0 %v244
        %v312 = vpop.f32.mrb[0].mxu0
        %v313 = vadd.f32 0.0, %v312
        %v314 = vpop.f32.mrb[0].mxu0
        %315 = vdwg.mxu0
        %v317 = vsel %vm169, %v167, 0
        %319 = vmatprep.subr.mxu0 0.0
        %320 = vmatpush1.xpose.msra.mxu0 %v317
        %321 = vmatprep.subr.mxu0 0.0
        %322 = vmatpush1.xpose.msra.mxu0 0.0
        %323 = vmatprep.subr.mxu0 0.0
        %324 = vmatpush1.xpose.msra.mxu0 0.0
        %325 = vmatprep.subr.mxu0 0.0
        %326 = vmatpush1.xpose.msra.mxu0 0.0
        %327 = vmatprep.subr.mxu0 0.0
        %328 = vmatpush1.xpose.msra.mxu0 0.0
        %329 = vmatprep.subr.mxu0 0.0
        %330 = vmatpush1.xpose.msra.mxu0 0.0
        %331 = vmatprep.subr.mxu0 0.0
        %332 = vmatpush1.xpose.msra.mxu0 0.0
        %333 = vmatprep.subr.mxu0 0.0
        %334 = vmatpush1.xpose.msra.mxu0 0.0
        %335 = vmatprep.subr.mxu0 0.0
        %336 = vmatpush1.xpose.msra.mxu0 0.0
        %337 = vmatprep.subr.mxu0 0.0
        %338 = vmatpush1.xpose.msra.mxu0 0.0
        %339 = vmatprep.subr.mxu0 0.0
        %340 = vmatpush1.xpose.msra.mxu0 0.0
        %341 = vmatprep.subr.mxu0 0.0
        %342 = vmatpush1.xpose.msra.mxu0 0.0
        %343 = vmatprep.subr.mxu0 0.0
        %344 = vmatpush1.xpose.msra.mxu0 0.0
        %345 = vmatprep.subr.mxu0 0.0
        %346 = vmatpush1.xpose.msra.mxu0 0.0
        %347 = vmatprep.subr.mxu0 0.0
        %348 = vmatpush1.xpose.msra.mxu0 0.0
        %349 = vmatprep.subr.mxu0 0.0
        %350 = vmatpush1.xpose.msra.mxu0 0.0
        %351 = vmatprep.subr.mxu0 0.0
        %352 = vmatpush1.xpose.msra.mxu0 0.0
        %353 = vmatprep.subr.mxu0 0.0
        %354 = vmatpush1.xpose.msra.mxu0 0.0
        %355 = vmatprep.subr.mxu0 0.0
        %356 = vmatpush1.xpose.msra.mxu0 0.0
        %357 = vmatprep.subr.mxu0 0.0
        %358 = vmatpush1.xpose.msra.mxu0 0.0
        %359 = vmatprep.subr.mxu0 0.0
        %360 = vmatpush1.xpose.msra.mxu0 0.0
        %361 = vmatprep.subr.mxu0 0.0
        %362 = vmatpush1.xpose.msra.mxu0 0.0
        %363 = vmatprep.subr.mxu0 0.0
        %364 = vmatpush1.xpose.msra.mxu0 0.0
        %365 = vmatprep.subr.mxu0 0.0
        %366 = vmatpush1.xpose.msra.mxu0 0.0
        %367 = vmatprep.subr.mxu0 0.0
        %368 = vmatpush1.xpose.msra.mxu0 0.0
        %369 = vmatprep.subr.mxu0 0.0
        %370 = vmatpush1.xpose.msra.mxu0 0.0
        %371 = vmatprep.subr.mxu0 0.0
        %372 = vmatpush1.xpose.msra.mxu0 0.0
        %373 = vmatprep.subr.mxu0 0.0
        %374 = vmatpush1.xpose.msra.mxu0 0.0
        %375 = vmatprep.subr.mxu0 0.0
        %376 = vmatpush1.xpose.msra.mxu0 0.0
        %377 = vmatprep.subr.mxu0 0.0
        %378 = vmatpush1.xpose.msra.mxu0 0.0
        %379 = vmatprep.subr.mxu0 0.0
        %380 = vmatpush1.xpose.msra.mxu0 0.0
        %381 = vmatprep.subr.mxu0 0.0
        %382 = vmatpush1.xpose.msra.mxu0 0.0
        %383 = vmatprep.mubr.f32.mxu0 0.0
        %384 = vmatmul.mubr.f32.gmra.mrb[0].mxu0 %v317
        %v385 = vpop.f32.mrb[0].mxu0
        %v386 = vadd.f32 0.0, %v385
        %v387 = vpop.f32.mrb[0].mxu0
        %388 = vdwg.mxu0
        %v389 = vmul.f32 %v165, %v165
        %v390 = vmul.f32 %v166, %v166
        %v391 = vmul.f32 %v167, %v167
        %v392 = vsel %vm169, %v389, 0.0
        %393 = vadd.xlane.f32.xlu0 %v392
        %v394 = vpop.xlane.xlu0 %393
        %v395 = vsel %vm169, %v390, 0.0
        %396 = vadd.xlane.f32.xlu0 %v395
        %v397 = vpop.xlane.xlu0 %396
        %v398 = vsel %vm169, %v391, 0.0
        %399 = vadd.xlane.f32.xlu0 %v398
        %v400 = vpop.xlane.xlu0 %399
        %v404 = vlaneseq
        %v405 = vand.u32 %v404, 127
        %v406 = vlaneseq
        %v407 = vshrl.u32 %v406, 7
        %v408 = vsub.s32 %v405, %v407
        %v409 = vrot.slane %v394, %v408
        %v410 = vlaneseq
        %v411 = vshrl.u32 %v410, 7
        %v412 = vsub.s32 %v405, %v411
        %v413 = vrot.slane %v397, %v412
        %v414 = vlaneseq
        %v415 = vshrl.u32 %v414, 7
        %v416 = vsub.s32 %v405, %v415
        %v417 = vrot.slane %v400, %v416
        %vm418 = vcmask 1041409
        %vm419 = vcmask 1042434
        %v420 = vsel %vm419, %v409, %v409
        %vm421 = vcmask 1043459
        %v422 = vsel %vm421, %v409, %v420
        %vm423 = vcmask 1044484
        %v424 = vsel %vm423, %v409, %v422
        %vm425 = vcmask 1045509
        %v426 = vsel %vm425, %v409, %v424
        %vm427 = vcmask 1046534
        %v428 = vsel %vm427, %v409, %v426
        %vm429 = vcmask 1047559
        %v430 = vsel %vm429, %v409, %v428
        %v431 = vsel %vm419, %v413, %v413
        %v432 = vsel %vm421, %v413, %v431
        %v433 = vsel %vm423, %v413, %v432
        %v434 = vsel %vm425, %v413, %v433
        %v435 = vsel %vm427, %v413, %v434
        %v436 = vsel %vm429, %v413, %v435
        %v437 = vsel %vm419, %v417, %v417
        %v438 = vsel %vm421, %v417, %v437
        %v439 = vsel %vm423, %v417, %v438
        %v440 = vsel %vm425, %v417, %v439
        %v441 = vsel %vm427, %v417, %v440
        %v442 = vsel %vm429, %v417, %v441
        %v446 = vadd.f32 %v394, %v430
        %v447 = vadd.f32 %v397, %v436
        %v448 = vadd.f32 %v400, %v442
        %v449 = vmul.f32 %v240, 2.0
        %v450 = vmul.f32 %v313, 2.0
        %v451 = vmul.f32 %v386, 2.0
        %v452 = vsub.f32 %v446, %v449
        %v453 = vsub.f32 %v447, %v450
        %v454 = vsub.f32 %v448, %v451
        %v455 = vmax.f32 %v452, 0.0
        %v456 = vmax.f32 %v453, 0.0
        %v457 = vmax.f32 %v454, 0.0
        %v458 = vstv %s168
        %v459 = vmul.f32 %v458, %v455
        %v460 = vmul.f32 %v458, %v456
        %v461 = vmul.f32 %v458, %v457
        %v462 = vadd.f32 %v459, 1e-05
        %v463 = vadd.f32 %v460, 1e-05
        %v464 = vadd.f32 %v461, 1e-05
        %v465 = vrsqrt.pop %v462
        %v466 = vmul.f32 %v462, %v465
        %vm467 = vcmp.eq.f32.partialorder %v462, inf
        %v468 = vsel %vm467, %v462, %v466
        %vm469 = vcmp.eq.f32.partialorder %v462, 0.0
        %v470 = vand.u32 %v462, 2147483648
        %v471 = vsel %vm469, %v470, %v468
        %v472 = vrsqrt.pop %v463
        %v473 = vmul.f32 %v463, %v472
        %vm474 = vcmp.eq.f32.partialorder %v463, inf
        %v475 = vsel %vm474, %v463, %v473
        %vm476 = vcmp.eq.f32.partialorder %v463, 0.0
        %v477 = vand.u32 %v463, 2147483648
        %v478 = vsel %vm476, %v477, %v475
        %v479 = vrsqrt.pop %v464
        %v480 = vmul.f32 %v464, %v479
        %vm481 = vcmp.eq.f32.partialorder %v464, inf
        %v482 = vsel %vm481, %v464, %v480
        %vm483 = vcmp.eq.f32.partialorder %v464, 0.0
        %v484 = vand.u32 %v464, 2147483648
        %v485 = vsel %vm483, %v484, %v482
        %vm486 = vcmask 64512
        %v487 = vsel %vm486, %v471, 0.0
        %488 = vadd.xlane.f32.xlu0 %v487
        %v489 = vpop.xlane.xlu0 %488
        %v490 = vsel %vm486, %v478, 0.0
        %491 = vadd.xlane.f32.xlu0 %v490
        %v492 = vpop.xlane.xlu0 %491
        %v493 = vsel %vm486, %v485, 0.0
        %494 = vadd.xlane.f32.xlu0 %v493
        %v495 = vpop.xlane.xlu0 %494
        %v496 = vmul.f32 %v489, 0.125
        %v497 = vmul.f32 %v492, 0.125
        %v498 = vmul.f32 %v495, 0.125
        %v502 = vlaneseq
        %v503 = vshrl.u32 %v502, 7
        %v504 = vsub.s32 %v405, %v503
        %v505 = vrot.slane %v496, %v504
        %v506 = vlaneseq
        %v507 = vshrl.u32 %v506, 7
        %v508 = vsub.s32 %v405, %v507
        %v509 = vrot.slane %v497, %v508
        %v510 = vlaneseq
        %v511 = vshrl.u32 %v510, 7
        %v512 = vsub.s32 %v405, %v511
        %v513 = vrot.slane %v498, %v512
        %v514 = vsel %vm418, %v509, %v505
        %v515 = vsel %vm419, %v513, %v514
        %vm517 = vcmask 59392
        %v518 = vsel %vm517, %v515, 0.0
        %519 = vadd.xlane.f32.xlu0 %v518
        %v520 = vpop.xlane.xlu0 %519
        %v521 = vmul.f32 %v520, 0.125
        %v522 = vsub.f32 %v471, %v496
        %v523 = vsub.f32 %v478, %v497
        %v524 = vsub.f32 %v485, %v498
        %v525 = vsel %vm419, %v505, %v505
        %v526 = vsel %vm421, %v505, %v525
        %v527 = vsel %vm423, %v505, %v526
        %v528 = vsel %vm425, %v505, %v527
        %v529 = vsel %vm427, %v505, %v528
        %v530 = vsel %vm429, %v505, %v529
        %v531 = vsel %vm419, %v509, %v509
        %v532 = vsel %vm421, %v509, %v531
        %v533 = vsel %vm423, %v509, %v532
        %v534 = vsel %vm425, %v509, %v533
        %v535 = vsel %vm427, %v509, %v534
        %v536 = vsel %vm429, %v509, %v535
        %v537 = vsel %vm419, %v513, %v513
        %v538 = vsel %vm421, %v513, %v537
        %v539 = vsel %vm423, %v513, %v538
        %v540 = vsel %vm425, %v513, %v539
        %v541 = vsel %vm427, %v513, %v540
        %v542 = vsel %vm429, %v513, %v541
        %v546 = vsub.f32 %v522, %v530
        %v547 = vsub.f32 %v523, %v536
        %v548 = vsub.f32 %v524, %v542
        %v550 = vlaneseq
        %v551 = vshrl.u32 %v550, 7
        %v552 = vsub.s32 0, %v551
        %v553 = vrot.slane %v521, %v552
        %v554 = vlaneseq
        %v555 = vshrl.u32 %v554, 7
        %v556 = vsub.s32 1, %v555
        %v557 = vrot.slane %v521, %v556
        %v558 = vlaneseq
        %v559 = vshrl.u32 %v558, 7
        %v560 = vsub.s32 2, %v559
        %v561 = vrot.slane %v521, %v560
        %v565 = vadd.f32 %v546, %v553
        %v566 = vadd.f32 %v547, %v557
        %v567 = vadd.f32 %v548, %v561
        %568 = vst.msk [vmem:[%s162] sm:$0xff] %vm486, %v565
        %569 = vst.msk [vmem:[%s162 + $0x8] sm:$0xff] %vm486, %v566
        %570 = vst.msk [vmem:[%s162 + $0x10] sm:$0xff] %vm486, %v567
        %s571 = sand.u32 %s75, 1
        %s572 = scalar_lea.sflag [#allocation5], %s571
        %s573 = sand.u32 %s75, 1
        %s574 = smul.addr %s573, 24
        %s575 = scalar_lea.vmem [#allocation6], %s574
        // Predicated region
        $region33: #{tpu_custom_call.1} parent=27 // pred_check
          %p576 = pneg %p85
        $region34: #{tpu_custom_call.1} parent=27 // pred_check_branch
          %578 = sbr.rel (%p576) target = $region36
        $region35: #{tpu_custom_call.1} parent=27 // pred_region
          %s579 = smul.u32 3, %s20
          %s581 = ssub.s32 384, 384
          %582 = vsyncadd %s572, %s581
          %s583 = smul.addr %s579, 128
          %s584 = scalar_lea.hbm %s2, %s583
          %s585 = sshll.u32 %s575, 4
          %s586 = int_to_ptr.vmem [resolvable:$true] %s585
          %591 = dma.vmem_to_hbm [thread:$0]  %s586, 384, %s584, %s572, 128, 128, 8
        $region36: #{tpu_custom_call.1} parent=27 // pred_fallthru
          _
      $region28: #{tpu_custom_call.1} parent=5 // pred_fallthru
        _
      %p592 = scmp.le.s32.totalorder 2, %s15
      // Predicated region
      $region37: #{tpu_custom_call.1} parent=5 // pred_check
        %p593 = pneg %p592
      $region38: #{tpu_custom_call.1} parent=5 // pred_check_branch
        %595 = sbr.rel (%p593) target = $region40
      $region39: #{tpu_custom_call.1} parent=5 // pred_region
        %s596 = ssub.s32 %s15, 2
        // Predicated region
        $region41: #{tpu_custom_call.1} parent=39 // pred_check
          %p597 = pneg %p91
        $region42: #{tpu_custom_call.1} parent=39 // pred_check_branch
          %599 = sbr.rel (%p597) target = $region44
        $region43: #{tpu_custom_call.1} parent=39 // pred_region
          %s600 = sand.u32 %s76, 1
          %s601 = scalar_lea.sflag [#allocation5], %s600
          %s602 = sand.u32 %s76, 1
          %s603 = smul.addr %s602, 24
          %s604 = scalar_lea.vmem [#allocation6], %s603
          %605 = dma.done %s601, 384
        $region44: #{tpu_custom_call.1} parent=39 // pred_fallthru
          _
      $region40: #{tpu_custom_call.1} parent=5 // pred_fallthru
        _
    $region6: #{tpu_custom_call.1} parent=1 // loop_footer
      %s19 = sadd.s32 1, %s15
    $region7: #{tpu_custom_call.1} parent=1 // loop_footer_branch
      %14 = sbr.rel target = $region3
    $region8: #{tpu_custom_call.1} parent=1 // loop_exit
      _
    %606 = vsyncpa [#allocation4], 1
    %s607 = scalar_lea.sflag [#allocation4], 1
    %608 = vsyncpa %s607, 1
    %609 = vsyncpa [#allocation5], 1
    %s610 = scalar_lea.sflag [#allocation5], 1
    %611 = vsyncpa %s610, 1

</llo_original>
